<compile_context>
chip_gen: v7x
topology: tpu7x:2x2x1
jax: 0.10.0
libtpu: 0.0.40
codegen_flags: <defaults>
</compile_context>

<pallas_src>
import jax
import jax.numpy as jnp
from jax.experimental import pallas as pl
from jax.experimental.pallas import tpu as pltpu


def _conv1x1_sigmoid_kernel(x_ref, w_ref, b_ref, o_ref):
    # x_ref: VMEM (Cin, TM)   -- spatial on lanes (lane-dense)
    # w_ref: SMEM (Cout, Cin) -- scalar weights
    # b_ref: SMEM (Cout,)     -- scalar bias
    # o_ref: VMEM (Cout, TM)  -- lane-dense output
    cout, cin = w_ref.shape
    tm = x_ref.shape[-1]

    x = x_ref[...].astype(jnp.float32)  # (Cin, TM), f32 accumulate (v5e-safe)

    rows = []
    for co in range(cout):  # fully unrolled VPU contraction (Cout*Cin FMAs)
        acc = jnp.full((1, tm), b_ref[co], dtype=jnp.float32)
        for ci in range(cin):
            acc = acc + w_ref[co, ci] * x[ci:ci + 1, :]
        rows.append(acc)
    y = jnp.concatenate(rows, axis=0)  # (Cout, TM)

    # sigmoid(y) = 1 / (1 + exp(-y)); exp and approx reciprocal both on EUP.
    denom = 1.0 + jnp.exp(-y)
    o_ref[...] = pl.reciprocal(denom, approx=True).astype(o_ref.dtype)


def out_unit_forward(x_nchw, weight, bias, *, tm=32768):
    """1x1 conv + sigmoid.

    x_nchw: (N, Cin, H, W); weight: (Cout, Cin, 1, 1); bias: (Cout,).
    Returns (N, Cout, H, W) in x_nchw.dtype.
    """
    n, cin, h, w = x_nchw.shape
    cout = weight.shape[0]
    m = h * w

    # Free reshapes only: NCHW is already channel-major.
    x3 = x_nchw.reshape(n, cin, m)                        # (N, Cin, M)
    w_mat = weight.reshape(cout, cin).astype(jnp.float32)  # (Cout, Cin) -> SMEM
    b_vec = bias.reshape(cout).astype(jnp.float32)         # (Cout,)     -> SMEM

    # Lane-aligned tile size; ceil-divided grid handles the ragged boundary
    # block in-kernel (OOB lanes are simply not stored), so no jnp.pad copy
    # and no output slice are needed.
    tm = max(128, (tm // 128) * 128)
    m_up = ((m + 127) // 128) * 128
    tm_eff = min(tm, m_up)
    grid = (n, pl.cdiv(m, tm_eff))

    out3 = pl.pallas_call(
        _conv1x1_sigmoid_kernel,
        out_shape=jax.ShapeDtypeStruct((n, cout, m), x_nchw.dtype),
        grid_spec=pltpu.PrefetchScalarGridSpec(
            num_scalar_prefetch=0,
            grid=grid,
            in_specs=[
                # (Cin, TM) activation tile, batch dim squeezed out.
                pl.BlockSpec((None, cin, tm_eff), lambda i, j: (i, 0, j)),
                # Tiny weight / bias tables live in SMEM for scalar reads.
                pl.BlockSpec(memory_space=pltpu.MemorySpace.SMEM),
                pl.BlockSpec(memory_space=pltpu.MemorySpace.SMEM),
            ],
            out_specs=pl.BlockSpec((None, cout, tm_eff), lambda i, j: (i, 0, j)),
        ),
        compiler_params=pltpu.CompilerParams(
            dimension_semantics=("parallel", "parallel"),
        ),
    )(x3, w_mat, b_vec)

    return out3.reshape(n, cout, h, w)


def _ref_forward(x, weight, bias):
    cout, cin = weight.shape[:2]
    return jax.nn.sigmoid(
        jnp.einsum("nchw,oc->nohw", x, weight.reshape(cout, cin))
        + bias[None, :, None, None]
    )


if __name__ == "__main__":
    key = jax.random.PRNGKey(0)
    k_x, k_w, k_b = jax.random.split(key, 3)

    N, Cin, H, W = 2, 4, 16, 16
    Cout = 3

    x = jax.random.normal(k_x, (N, Cin, H, W), dtype=jnp.float32)
    # deterministic synthetic params (shapes match nn.Conv2d(Cin, Cout, 1))
    weight = jax.random.normal(k_w, (Cout, Cin, 1, 1), dtype=jnp.float32) * 0.1
    bias = jax.random.normal(k_b, (Cout,), dtype=jnp.float32) * 0.1

    out = out_unit_forward(x, weight, bias)
    jax.block_until_ready(out)

    # Kernel uses the EUP approximate-reciprocal path (~1e-4 abs error on
    # values in (0,1)); real layout/contraction bugs would be O(0.1-1) errors,
    # so 2e-3 is a meaningful check.
    ref = _ref_forward(x, weight, bias)
    assert out.shape == (N, Cout, H, W)
    assert jnp.allclose(out, ref, atol=2e-3, rtol=2e-3), float(
        jnp.max(jnp.abs(out - ref))
    )

    # Non-128-aligned spatial size exercises the partial-boundary-block path
    # (no host-side pad / slice, no extra HBM round trip).
    H2, W2 = 13, 9
    x2 = jax.random.normal(k_x, (N, Cin, H2, W2), dtype=jnp.float32)
    out2 = out_unit_forward(x2, weight, bias)
    jax.block_until_ready(out2)
    ref2 = _ref_forward(x2, weight, bias)
    assert out2.shape == (N, Cout, H2, W2)
    assert jnp.allclose(out2, ref2, atol=2e-3, rtol=2e-3), float(
        jnp.max(jnp.abs(out2 - ref2))
    )

    print("KERNEL_OK")
</pallas_src>

<mosaic_0001>
module attributes {stable_mosaic.version = 11 : i64} {
  func.func @_conv1x1_sigmoid_kernel(%arg0: i32, %arg1: i32, %arg2: memref<1x4x256xf32, #tpu.memory_space<vmem>>, %arg3: memref<3x4xf32, #tpu.memory_space<smem>>, %arg4: memref<3xf32, #tpu.memory_space<smem>>, %arg5: memref<1x3x256xf32, #tpu.memory_space<vmem>>) attributes {dimension_semantics = [#tpu.dimension_semantics<parallel>, #tpu.dimension_semantics<parallel>], iteration_bounds = array<i64: 2, 1>, scalar_prefetch = 0 : i64, scratch_operands = 0 : i64, tpu.core_type = #tpu.core_type<tc>, window_params = [{transform_indices = @transform_0, window_bounds = array<i64: 1, 4, 256>}, {transform_indices = @transform_1, window_bounds = array<i64: 3, 4>}, {transform_indices = @transform_2, window_bounds = array<i64: 3>}, {transform_indices = @transform_3, window_bounds = array<i64: 1, 3, 256>}]} {
    %c0 = arith.constant 0 : index
    %c0_0 = arith.constant 0 : index
    %c0_1 = arith.constant 0 : index
    %0 = vector.load %arg2[%c0, %c0_0, %c0_1] : memref<1x4x256xf32, #tpu.memory_space<vmem>>, vector<1x4x256xf32>
    %1 = vector.shape_cast %0 : vector<1x4x256xf32> to vector<4x256xf32>
    %c0_2 = arith.constant 0 : index
    %2 = memref.load %arg4[%c0_2] : memref<3xf32, #tpu.memory_space<smem>>
    %3 = vector.broadcast %2 : f32 to vector<1x256xf32>
    %c0_3 = arith.constant 0 : index
    %c0_4 = arith.constant 0 : index
    %4 = memref.load %arg3[%c0_3, %c0_4] : memref<3x4xf32, #tpu.memory_space<smem>>
    %5 = vector.extract_strided_slice %1 {offsets = [0, 0], sizes = [1, 256], strides = [1, 1]} : vector<4x256xf32> to vector<1x256xf32>
    %6 = vector.broadcast %4 : f32 to vector<1x256xf32>
    %7 = arith.mulf %6, %5 : vector<1x256xf32>
    %8 = arith.addf %3, %7 : vector<1x256xf32>
    %c0_5 = arith.constant 0 : index
    %c1 = arith.constant 1 : index
    %9 = memref.load %arg3[%c0_5, %c1] : memref<3x4xf32, #tpu.memory_space<smem>>
    %10 = vector.extract_strided_slice %1 {offsets = [1, 0], sizes = [1, 256], strides = [1, 1]} : vector<4x256xf32> to vector<1x256xf32>
    %11 = vector.broadcast %9 : f32 to vector<1x256xf32>
    %12 = arith.mulf %11, %10 : vector<1x256xf32>
    %13 = arith.addf %8, %12 : vector<1x256xf32>
    %c0_6 = arith.constant 0 : index
    %c2 = arith.constant 2 : index
    %14 = memref.load %arg3[%c0_6, %c2] : memref<3x4xf32, #tpu.memory_space<smem>>
    %15 = vector.extract_strided_slice %1 {offsets = [2, 0], sizes = [1, 256], strides = [1, 1]} : vector<4x256xf32> to vector<1x256xf32>
    %16 = vector.broadcast %14 : f32 to vector<1x256xf32>
    %17 = arith.mulf %16, %15 : vector<1x256xf32>
    %18 = arith.addf %13, %17 : vector<1x256xf32>
    %c0_7 = arith.constant 0 : index
    %c3 = arith.constant 3 : index
    %19 = memref.load %arg3[%c0_7, %c3] : memref<3x4xf32, #tpu.memory_space<smem>>
    %20 = vector.extract_strided_slice %1 {offsets = [3, 0], sizes = [1, 256], strides = [1, 1]} : vector<4x256xf32> to vector<1x256xf32>
    %21 = vector.broadcast %19 : f32 to vector<1x256xf32>
    %22 = arith.mulf %21, %20 : vector<1x256xf32>
    %23 = arith.addf %18, %22 : vector<1x256xf32>
    %c1_8 = arith.constant 1 : index
    %24 = memref.load %arg4[%c1_8] : memref<3xf32, #tpu.memory_space<smem>>
    %25 = vector.broadcast %24 : f32 to vector<1x256xf32>
    %c1_9 = arith.constant 1 : index
    %c0_10 = arith.constant 0 : index
    %26 = memref.load %arg3[%c1_9, %c0_10] : memref<3x4xf32, #tpu.memory_space<smem>>
    %27 = vector.extract_strided_slice %1 {offsets = [0, 0], sizes = [1, 256], strides = [1, 1]} : vector<4x256xf32> to vector<1x256xf32>
    %28 = vector.broadcast %26 : f32 to vector<1x256xf32>
    %29 = arith.mulf %28, %27 : vector<1x256xf32>
    %30 = arith.addf %25, %29 : vector<1x256xf32>
    %c1_11 = arith.constant 1 : index
    %c1_12 = arith.constant 1 : index
    %31 = memref.load %arg3[%c1_11, %c1_12] : memref<3x4xf32, #tpu.memory_space<smem>>
    %32 = vector.extract_strided_slice %1 {offsets = [1, 0], sizes = [1, 256], strides = [1, 1]} : vector<4x256xf32> to vector<1x256xf32>
    %33 = vector.broadcast %31 : f32 to vector<1x256xf32>
    %34 = arith.mulf %33, %32 : vector<1x256xf32>
    %35 = arith.addf %30, %34 : vector<1x256xf32>
    %c1_13 = arith.constant 1 : index
    %c2_14 = arith.constant 2 : index
    %36 = memref.load %arg3[%c1_13, %c2_14] : memref<3x4xf32, #tpu.memory_space<smem>>
    %37 = vector.extract_strided_slice %1 {offsets = [2, 0], sizes = [1, 256], strides = [1, 1]} : vector<4x256xf32> to vector<1x256xf32>
    %38 = vector.broadcast %36 : f32 to vector<1x256xf32>
    %39 = arith.mulf %38, %37 : vector<1x256xf32>
    %40 = arith.addf %35, %39 : vector<1x256xf32>
    %c1_15 = arith.constant 1 : index
    %c3_16 = arith.constant 3 : index
    %41 = memref.load %arg3[%c1_15, %c3_16] : memref<3x4xf32, #tpu.memory_space<smem>>
    %42 = vector.extract_strided_slice %1 {offsets = [3, 0], sizes = [1, 256], strides = [1, 1]} : vector<4x256xf32> to vector<1x256xf32>
    %43 = vector.broadcast %41 : f32 to vector<1x256xf32>
    %44 = arith.mulf %43, %42 : vector<1x256xf32>
    %45 = arith.addf %40, %44 : vector<1x256xf32>
    %c2_17 = arith.constant 2 : index
    %46 = memref.load %arg4[%c2_17] : memref<3xf32, #tpu.memory_space<smem>>
    %47 = vector.broadcast %46 : f32 to vector<1x256xf32>
    %c2_18 = arith.constant 2 : index
    %c0_19 = arith.constant 0 : index
    %48 = memref.load %arg3[%c2_18, %c0_19] : memref<3x4xf32, #tpu.memory_space<smem>>
    %49 = vector.extract_strided_slice %1 {offsets = [0, 0], sizes = [1, 256], strides = [1, 1]} : vector<4x256xf32> to vector<1x256xf32>
    %50 = vector.broadcast %48 : f32 to vector<1x256xf32>
    %51 = arith.mulf %50, %49 : vector<1x256xf32>
    %52 = arith.addf %47, %51 : vector<1x256xf32>
    %c2_20 = arith.constant 2 : index
    %c1_21 = arith.constant 1 : index
    %53 = memref.load %arg3[%c2_20, %c1_21] : memref<3x4xf32, #tpu.memory_space<smem>>
    %54 = vector.extract_strided_slice %1 {offsets = [1, 0], sizes = [1, 256], strides = [1, 1]} : vector<4x256xf32> to vector<1x256xf32>
    %55 = vector.broadcast %53 : f32 to vector<1x256xf32>
    %56 = arith.mulf %55, %54 : vector<1x256xf32>
    %57 = arith.addf %52, %56 : vector<1x256xf32>
    %c2_22 = arith.constant 2 : index
    %c2_23 = arith.constant 2 : index
    %58 = memref.load %arg3[%c2_22, %c2_23] : memref<3x4xf32, #tpu.memory_space<smem>>
    %59 = vector.extract_strided_slice %1 {offsets = [2, 0], sizes = [1, 256], strides = [1, 1]} : vector<4x256xf32> to vector<1x256xf32>
    %60 = vector.broadcast %58 : f32 to vector<1x256xf32>
    %61 = arith.mulf %60, %59 : vector<1x256xf32>
    %62 = arith.addf %57, %61 : vector<1x256xf32>
    %c2_24 = arith.constant 2 : index
    %c3_25 = arith.constant 3 : index
    %63 = memref.load %arg3[%c2_24, %c3_25] : memref<3x4xf32, #tpu.memory_space<smem>>
    %64 = vector.extract_strided_slice %1 {offsets = [3, 0], sizes = [1, 256], strides = [1, 1]} : vector<4x256xf32> to vector<1x256xf32>
    %65 = vector.broadcast %63 : f32 to vector<1x256xf32>
    %66 = arith.mulf %65, %64 : vector<1x256xf32>
    %67 = arith.addf %62, %66 : vector<1x256xf32>
    %68 = tpu.concatenate %23, %45, %67 in 0 : vector<1x256xf32>, vector<1x256xf32>, vector<1x256xf32> -> vector<3x256xf32>
    %cst = arith.constant 0.000000e+00 : f32
    %69 = vector.broadcast %cst : f32 to vector<3x256xf32>
    %70 = arith.subf %69, %68 : vector<3x256xf32>
    %71 = math.exp %70 : vector<3x256xf32>
    %cst_26 = arith.constant 1.000000e+00 : f32
    %72 = vector.broadcast %cst_26 : f32 to vector<3x256xf32>
    %73 = arith.addf %72, %71 : vector<3x256xf32>
    %74 = tpu.reciprocal %73 {approx = true} : vector<3x256xf32> -> vector<3x256xf32>
    %c0_27 = arith.constant 0 : index
    %c0_28 = arith.constant 0 : index
    %c0_29 = arith.constant 0 : index
    %75 = vector.load %arg5[%c0_27, %c0_28, %c0_29] : memref<1x3x256xf32, #tpu.memory_space<vmem>>, vector<1x3x256xf32>
    %76 = vector.shape_cast %75 : vector<1x3x256xf32> to vector<3x256xf32>
    %77 = vector.shape_cast %74 : vector<3x256xf32> to vector<1x3x256xf32>
    tpu.vector_store %arg5[%c0_27, %c0_28, %c0_29], %77 {strides = array<i32>} : memref<1x3x256xf32, #tpu.memory_space<vmem>>, vector<1x3x256xf32>,
    return
  }
  func.func @transform_0(%arg0: i32, %arg1: i32) -> (i32, i32, i32) {
    %c0_i32 = arith.constant 0 : i32
    %c0_i32_0 = arith.constant 0 : i32
    return %arg0, %c0_i32, %arg1 : i32, i32, i32
  }
  func.func @transform_1(%arg0: i32, %arg1: i32) -> (i32, i32) {
    %c0_i32 = arith.constant 0 : i32
    %c0_i32_0 = arith.constant 0 : i32
    %c0_i32_1 = arith.constant 0 : i32
    return %c0_i32, %c0_i32_0 : i32, i32
  }
  func.func @transform_2(%arg0: i32, %arg1: i32) -> i32 {
    %c0_i32 = arith.constant 0 : i32
    %c0_i32_0 = arith.constant 0 : i32
    return %c0_i32 : i32
  }
  func.func @transform_3(%arg0: i32, %arg1: i32) -> (i32, i32, i32) {
    %c0_i32 = arith.constant 0 : i32
    %c0_i32_0 = arith.constant 0 : i32
    return %arg0, %c0_i32, %arg1 : i32, i32, i32
  }
}

</mosaic_0001>

<llo_original>
// kernel: tpu_custom_call.1
$region0: #{tpu_custom_call.1}
  #allocation0 [shape = 'u32[]', space=smem, size = 0x4, offset = 0x4, fixed_abs, tag = 'smem constant byte address 0x4 - core index']
  #allocation1 [shape = 'u32[144,128]{1,0:T(1,128)}', space=vmem, size = 0x12000, scoped, tag = 'internal scratch']
  %s0 = inlined_call_operand.hbm [shape: f32[2,4,256], index: 0, kind: input, shape index: {}]
  %s1 = inlined_call_operand.hbm [shape: f32[3,4], index: 1, kind: input, shape index: {}]
  %s2 = inlined_call_operand.vmem [shape: f32[3], index: 2, kind: input, shape index: {}]
  %s3 = inlined_call_operand.vmem [shape: f32[2,3,256], index: 3, kind: output, shape index: {}]
  %s4 = sld [smem:[#allocation0]]
  $region57: #{tpu_custom_call.1} parent=0
    _
  %s6 = ssub.s32 1, %s4
  %s7 = scalar_select 0, %s6, %s4
  $region1: #{tpu_custom_call.1} parent=0
    #allocation2 [shape = 'u8[8192]{0}', space=vmem, size = 0x2000, scoped, tag = 'input window, operand 0']
    #allocation3 [shape = 's32[2]{0}', space=sflag, size = 0x8, scoped, tag = 'scoped memory for tpu_custom_call.1']
    #allocation4 [shape = 's32[2]{0}', space=sflag, size = 0x8, scoped, tag = 'scoped memory for tpu_custom_call.1']
    #allocation5 [shape = 's32[2]{0}', space=sflag, size = 0x8, scoped, tag = 'scoped memory for tpu_custom_call.1']
    #allocation6 [shape = 'u8[2048]{0}', space=smem, size = 0x800, scoped, tag = 'input window, operand 1, single buffered']
    #allocation7 [shape = 'u8[512]{0}', space=smem, size = 0x200, scoped, tag = 'input window, operand 2, single buffered']
    %8 = vsyncpa [#allocation3], 0
    %s9 = scalar_lea.sflag [#allocation3], 1
    %10 = vsyncpa %s9, 0
    %11 = vsyncpa [#allocation4], 0
    %12 = vsyncpa [#allocation5], 0
    loop: start=0, step=1, limit=4
    $region2: #{tpu_custom_call.1} parent=1 // loop_pre_header
      _
    $region3: #{tpu_custom_call.1} parent=1 // loop_header
      %s14 = sphi 0, %s18
      %p15 = scmp.ge.s32.totalorder %s14, 4
      %s21 = sphi 0, %s33
      %s22 = sphi 0, %s29
      %s23 = sphi 0, %s21
      %s24 = sphi 0, %s22
      %s25 = sphi 0, %s23
      %s26 = sphi 0, %s24
      %s38 = sphi 0, %s40
      %s41 = sphi 0, %s38
      %s42 = sphi 0, %s41
      %s58 = sphi 0, %s42
      %s62 = sphi 0, %s62
      %s64 = sphi 0, %s62
      %s65 = sphi 0, %s64
      %s79 = sphi 0, %s65
      %s83 = sphi 0, %s83
      %s85 = sphi 0, %s83
      %s86 = sphi 0, %s85
      %s100 = sphi 0, %s86
      %s108 = sphi 0, %s110
      %s111 = sphi 0, %s108
      %s112 = sphi 0, %s111
      %s128 = sphi 0, %s112
    $region4: #{tpu_custom_call.1} parent=1 // loop_header_branch
      %17 = sbr.rel (%p15) target = $region8
    $region5: #{tpu_custom_call.1} parent=1 // loop_body
      %s19 = ssub.s32 %s14, 1
      %s20 = ssub.s32 %s14, 2
      %s27 = sadd.s32 1, %s22
      %p28 = scmp.ge.s32.totalorder %s27, 1
      %s29 = scalar_select %p28, 0, %s27
      %s30 = sadd.s32 1, %s21
      %s31 = scalar_select %p28, %s30, %s21
      %p32 = scmp.ge.s32.totalorder %s31, 2
      %s33 = scalar_select %p32, 0, %s31
      %s34 = ssub.s32 %s21, %s33
      %s35 = ssub.s32 %s22, %s29
      %s36 = sor.u32 %s34, %s35
      %p37 = scmp.eq.s32.totalorder %s36, 0
      %s39 = sadd.s32 %s38, 1
      %s40 = scalar_select %p37, %s38, %s39
      %p43 = pneg %p37
      %p44 = scmp.eq.s32.totalorder %s14, 1
      %p45 = por %p43, %p44
      %p46 = scmp.ne.s32.totalorder %s38, %s41
      %p47 = scmp.eq.s32.totalorder %s14, 0
      %p48 = por %p46, %p47
      %p49 = scmp.ne.s32.totalorder %s38, %s41
      %p50 = scmp.eq.s32.totalorder %s19, 1
      %p51 = por %p49, %p50
      %p52 = scmp.ne.s32.totalorder %s41, %s42
      %p53 = scmp.eq.s32.totalorder %s19, 0
      %p54 = por %p52, %p53
      %p55 = scmp.ne.s32.totalorder %s41, %s42
      %p56 = scmp.eq.s32.totalorder %s20, 1
      %p57 = por %p55, %p56
      %p59 = scmp.ne.s32.totalorder %s42, %s58
      %p60 = scmp.eq.s32.totalorder %s20, 0
      %p61 = por %p59, %p60
      %s63 = sadd.s32 %s62, 1
      %p66 = scmp.eq.s32.totalorder %s14, 1
      %p67 = scmp.ne.s32.totalorder %s62, %s64
      %p68 = scmp.eq.s32.totalorder %s14, 0
      %p69 = por %p67, %p68
      %p70 = scmp.ne.s32.totalorder %s62, %s64
      %p71 = scmp.eq.s32.totalorder %s19, 1
      %p72 = por %p70, %p71
      %p73 = scmp.ne.s32.totalorder %s64, %s65
      %p74 = scmp.eq.s32.totalorder %s19, 0
      %p75 = por %p73, %p74
      %p76 = scmp.ne.s32.totalorder %s64, %s65
      %p77 = scmp.eq.s32.totalorder %s20, 1
      %p78 = por %p76, %p77
      %p80 = scmp.ne.s32.totalorder %s65, %s79
      %p81 = scmp.eq.s32.totalorder %s20, 0
      %p82 = por %p80, %p81
      %s84 = sadd.s32 %s83, 1
      %p87 = scmp.eq.s32.totalorder %s14, 1
      %p88 = scmp.ne.s32.totalorder %s83, %s85
      %p89 = scmp.eq.s32.totalorder %s14, 0
      %p90 = por %p88, %p89
      %p91 = scmp.ne.s32.totalorder %s83, %s85
      %p92 = scmp.eq.s32.totalorder %s19, 1
      %p93 = por %p91, %p92
      %p94 = scmp.ne.s32.totalorder %s85, %s86
      %p95 = scmp.eq.s32.totalorder %s19, 0
      %p96 = por %p94, %p95
      %p97 = scmp.ne.s32.totalorder %s85, %s86
      %p98 = scmp.eq.s32.totalorder %s20, 1
      %p99 = por %p97, %p98
      %p101 = scmp.ne.s32.totalorder %s86, %s100
      %p102 = scmp.eq.s32.totalorder %s20, 0
      %p103 = por %p101, %p102
      %s104 = ssub.s32 %s21, %s33
      %s105 = ssub.s32 %s22, %s29
      %s106 = sor.u32 %s104, %s105
      %p107 = scmp.eq.s32.totalorder %s106, 0
      %s109 = sadd.s32 %s108, 1
      %s110 = scalar_select %p107, %s108, %s109
      %p113 = pneg %p107
      %p114 = scmp.eq.s32.totalorder %s14, 1
      %p115 = por %p113, %p114
      %p116 = scmp.ne.s32.totalorder %s108, %s111
      %p117 = scmp.eq.s32.totalorder %s14, 0
      %p118 = por %p116, %p117
      %p119 = scmp.ne.s32.totalorder %s108, %s111
      %p120 = scmp.eq.s32.totalorder %s19, 1
      %p121 = por %p119, %p120
      %p122 = scmp.ne.s32.totalorder %s111, %s112
      %p123 = scmp.eq.s32.totalorder %s19, 0
      %p124 = por %p122, %p123
      %p125 = scmp.ne.s32.totalorder %s111, %s112
      %p126 = scmp.eq.s32.totalorder %s20, 1
      %p127 = por %p125, %p126
      %p129 = scmp.ne.s32.totalorder %s112, %s128
      %p130 = scmp.eq.s32.totalorder %s20, 0
      %p131 = por %p129, %p130
      %p132 = scmp.le.s32.totalorder 1, %s14
      %p133 = scmp.lt.s32.totalorder %s14, 3
      %p134 = pnand %p132, %p133
      %p135 = pneg %p134
      // Predicated region
      $region9: #{tpu_custom_call.1} parent=5 // pred_check
        _
      $region10: #{tpu_custom_call.1} parent=5 // pred_check_branch
        %137 = sbr.rel (%p134) target = $region12
      $region11: #{tpu_custom_call.1} parent=5 // pred_region
        %s138 = ssub.s32 %s14, 1
        // Predicated region
        $region13: #{tpu_custom_call.1} parent=11 // pred_check
          %p139 = pneg %p75
        $region14: #{tpu_custom_call.1} parent=11 // pred_check_branch
          %141 = sbr.rel (%p139) target = $region16
        $region15: #{tpu_custom_call.1} parent=11 // pred_region
          %s143 = ssub.s32 64, 64
          %144 = vsyncadd [#allocation4], %s143
          %147 = dma.hbm_to_smem %s1, 64, [#allocation6], [#allocation4]
        $region16: #{tpu_custom_call.1} parent=11 // pred_fallthru
          _
        // Predicated region
        $region17: #{tpu_custom_call.1} parent=11 // pred_check
          %p148 = pneg %p96
        $region18: #{tpu_custom_call.1} parent=11 // pred_check_branch
          %150 = sbr.rel (%p148) target = $region20
        $region19: #{tpu_custom_call.1} parent=11 // pred_region
          %s152 = ssub.s32 16, 16
          %153 = vsyncadd [#allocation5], %s152
          %s155 = sshll.u32 %s2, 4
          %s156 = int_to_ptr.vmem [resolvable:$true] %s155
          %158 = dma.vmem_to_smem %s156, 16, [#allocation7], [#allocation5]
        $region20: #{tpu_custom_call.1} parent=11 // pred_fallthru
          _
      $region12: #{tpu_custom_call.1} parent=5 // pred_fallthru
        _
      %p159 = scmp.lt.s32.totalorder %s14, 2
      // Predicated region
      $region21: #{tpu_custom_call.1} parent=5 // pred_check
        %p160 = pneg %p159
      $region22: #{tpu_custom_call.1} parent=5 // pred_check_branch
        %162 = sbr.rel (%p160) target = $region24
      $region23: #{tpu_custom_call.1} parent=5 // pred_region
        // Predicated region
        $region25: #{tpu_custom_call.1} parent=23 // pred_check
          %p163 = pneg %p48
        $region26: #{tpu_custom_call.1} parent=23 // pred_check_branch
          %165 = sbr.rel (%p163) target = $region28
        $region27: #{tpu_custom_call.1} parent=23 // pred_region
          %s166 = sand.u32 %s38, 1
          %s167 = scalar_lea.sflag [#allocation3], %s166
          %s168 = sand.u32 %s38, 1
          %s169 = smul.addr %s168, 8
          %s170 = scalar_lea.vmem [#allocation2], %s169
          %s171 = smul.u32 2, %s22
          %s173 = ssub.s32 128, 128
          %174 = vsyncadd %s167, %s173
          %s175 = smul.addr %s21, 2
          %s176 = sadd.s32 %s171, %s175
          %s177 = smul.addr %s176, 64
          %s178 = scalar_lea.hbm %s0, %s177
          %s180 = sshll.u32 %s170, 4
          %s181 = int_to_ptr.vmem [resolvable:$true] %s180
          %183 = dma.hbm_to_vmem [thread:$0]  %s178, 128, %s181, %s167
        $region28: #{tpu_custom_call.1} parent=23 // pred_fallthru
          _
      $region24: #{tpu_custom_call.1} parent=5 // pred_fallthru
        _
      %p184 = scmp.le.s32.totalorder 1, %s14
      %p185 = scmp.lt.s32.totalorder %s14, 3
      %p186 = pnand %p184, %p185
      %p187 = pneg %p186
      // Predicated region
      $region29: #{tpu_custom_call.1} parent=5 // pred_check
        _
      $region30: #{tpu_custom_call.1} parent=5 // pred_check_branch
        %189 = sbr.rel (%p186) target = $region32
      $region31: #{tpu_custom_call.1} parent=5 // pred_region
        %s190 = ssub.s32 %s14, 1
        %s191 = sand.u32 %s41, 1
        %s192 = scalar_lea.sflag [#allocation3], %s191
        %s193 = sand.u32 %s41, 1
        %s194 = smul.addr %s193, 8
        %s195 = scalar_lea.vmem [#allocation2], %s194
        // Predicated region
        $region33: #{tpu_custom_call.1} parent=31 // pred_check
          %p196 = pneg %p54
        $region34: #{tpu_custom_call.1} parent=31 // pred_check_branch
          %198 = sbr.rel (%p196) target = $region36
        $region35: #{tpu_custom_call.1} parent=31 // pred_region
          %199 = dma.done %s192, 128
        $region36: #{tpu_custom_call.1} parent=31 // pred_fallthru
          _
        // Predicated region
        $region37: #{tpu_custom_call.1} parent=31 // pred_check
          %p200 = pneg %p75
        $region38: #{tpu_custom_call.1} parent=31 // pred_check_branch
          %202 = sbr.rel (%p200) target = $region40
        $region39: #{tpu_custom_call.1} parent=31 // pred_region
          %203 = dma.done [#allocation4], 64
        $region40: #{tpu_custom_call.1} parent=31 // pred_fallthru
          _
        // Predicated region
        $region41: #{tpu_custom_call.1} parent=31 // pred_check
          %p204 = pneg %p96
        $region42: #{tpu_custom_call.1} parent=31 // pred_check_branch
          %206 = sbr.rel (%p204) target = $region44
        $region43: #{tpu_custom_call.1} parent=31 // pred_region
          %207 = dma.done [#allocation5], 16
        $region44: #{tpu_custom_call.1} parent=31 // pred_fallthru
          _
        %208 = sfence
        %s209 = sand.u32 %s41, 1
        %s210 = scalar_lea.sflag [#allocation3], %s209
        %s211 = sand.u32 %s41, 1
        %s212 = smul.addr %s211, 8
        %s213 = scalar_lea.vmem [#allocation2], %s212
        %p214 = pneg %p54
        %p215 = pneg %p51
        %p216 = pneg %p75
        %p217 = pneg %p72
        %p218 = pneg %p96
        %p219 = pneg %p93
        %p220 = pneg %p124
        %p221 = pneg %p121
        %s222 = smul.u32 2, %s24
        %p223 = scmp.lt.s32.totalorder %s23, 1
        %s224 = scalar_select %p223, %s23, 1
        %p225 = scmp.lt.s32.totalorder %s222, 1
        %s226 = scalar_select %p225, %s222, 1
        %s227 = smul.addr %s224, 2
        %s228 = sadd.s32 %s226, %s227
        %s229 = smul.addr %s228, 4
        %s230 = scalar_lea.vmem %s3, %s229
        %s231 = smul.u32 2, %s24
        %s232 = smul.u32 2, %s24
        %p233 = scmp.lt.s32.totalorder %s23, 1
        %s234 = scalar_select %p233, %s23, 1
        %p235 = scmp.lt.s32.totalorder %s232, 1
        %s236 = scalar_select %p235, %s232, 1
        %s237 = smul.addr %s234, 2
        %s238 = sadd.s32 %s236, %s237
        %s239 = smul.addr %s238, 4
        %s240 = scalar_lea.vmem %s3, %s239
        %s241 = smul.u32 2, %s24
        %v242 = vld [vmem:[%s195] sm:$0xff]
        %s243 = sld [smem:[#allocation7]]
        %v244 = vstv %s243
        %s245 = sld [smem:[#allocation6]]
        %v246 = vstv %s245
        %v247 = vmul.f32 %v246, %v242
        %v248 = vadd.f32 %v244, %v247
        %s249 = sld [smem:[#allocation6 + $0x1]]
        %v250 = vstv %s249
        %v251 = vmul.f32 %v250, %v242
        %v253 = vrot.slane %v251, 5
        %v254 = vrot.slane %v253, 4
        %v256 = vadd.f32 %v248, %v254
        %s257 = sld [smem:[#allocation6 + $0x2]]
        %v258 = vstv %s257
        %v259 = vmul.f32 %v258, %v242
        %v261 = vrot.slane %v259, 6
        %v262 = vrot.slane %v261, 4
        %v264 = vadd.f32 %v256, %v262
        %s265 = sld [smem:[#allocation6 + $0x3]]
        %v266 = vstv %s265
        %v267 = vmul.f32 %v266, %v242
        %v269 = vrot.slane %v267, 7
        %v270 = vrot.slane %v269, 4
        %v272 = vadd.f32 %v264, %v270
        %s273 = sld [smem:[#allocation7 + $0x1]]
        %v274 = vstv %s273
        %s275 = sld [smem:[#allocation6 + $0x80]]
        %v276 = vstv %s275
        %v277 = vmul.f32 %v276, %v242
        %v278 = vadd.f32 %v274, %v277
        %s279 = sld [smem:[#allocation6 + $0x81]]
        %v280 = vstv %s279
        %v281 = vmul.f32 %v280, %v242
        %v283 = vrot.slane %v281, 5
        %v284 = vrot.slane %v283, 4
        %v286 = vadd.f32 %v278, %v284
        %s287 = sld [smem:[#allocation6 + $0x82]]
        %v288 = vstv %s287
        %v289 = vmul.f32 %v288, %v242
        %v291 = vrot.slane %v289, 6
        %v292 = vrot.slane %v291, 4
        %v294 = vadd.f32 %v286, %v292
        %s295 = sld [smem:[#allocation6 + $0x83]]
        %v296 = vstv %s295
        %v297 = vmul.f32 %v296, %v242
        %v299 = vrot.slane %v297, 7
        %v300 = vrot.slane %v299, 4
        %v302 = vadd.f32 %v294, %v300
        %s303 = sld [smem:[#allocation7 + $0x2]]
        %v304 = vstv %s303
        %s305 = sld [smem:[#allocation6 + $0x100]]
        %v306 = vstv %s305
        %v307 = vmul.f32 %v306, %v242
        %v308 = vadd.f32 %v304, %v307
        %s309 = sld [smem:[#allocation6 + $0x101]]
        %v310 = vstv %s309
        %v311 = vmul.f32 %v310, %v242
        %v313 = vrot.slane %v311, 5
        %v314 = vrot.slane %v313, 4
        %v316 = vadd.f32 %v308, %v314
        %s317 = sld [smem:[#allocation6 + $0x102]]
        %v318 = vstv %s317
        %v319 = vmul.f32 %v318, %v242
        %v321 = vrot.slane %v319, 6
        %v322 = vrot.slane %v321, 4
        %v324 = vadd.f32 %v316, %v322
        %s325 = sld [smem:[#allocation6 + $0x103]]
        %v326 = vstv %s325
        %v327 = vmul.f32 %v326, %v242
        %v329 = vrot.slane %v327, 7
        %v330 = vrot.slane %v329, 4
        %v332 = vadd.f32 %v324, %v330
        %v334 = vlaneseq
        %v335 = vshrl.u32 %v334, 7
        %v336 = vsub.s32 0, %v335
        %v337 = vrot.slane %v272, %v336
        %v338 = vlaneseq
        %v339 = vshrl.u32 %v338, 7
        %v340 = vsub.s32 4, %v339
        %v341 = vrot.slane %v272, %v340
        %v345 = vlaneseq
        %v346 = vshrl.u32 %v345, 7
        %v347 = vsub.s32 0, %v346
        %v348 = vrot.slane %v302, %v347
        %v349 = vlaneseq
        %v350 = vshrl.u32 %v349, 7
        %v351 = vsub.s32 4, %v350
        %v352 = vrot.slane %v302, %v351
        %v356 = vlaneseq
        %v357 = vshrl.u32 %v356, 7
        %v358 = vsub.s32 0, %v357
        %v359 = vrot.slane %v332, %v358
        %v360 = vlaneseq
        %v361 = vshrl.u32 %v360, 7
        %v362 = vsub.s32 4, %v361
        %v363 = vrot.slane %v332, %v362
        %vm366 = vcmask 1040384
        %v367 = vsel %vm366, %v337, %v348
        %v368 = vsel %vm366, %v341, %v352
        %vm369 = vcmask 1041408
        %v370 = vsel %vm369, %v367, %v359
        %v371 = vsel %vm369, %v368, %v363
        %v372 = vsub.f32 0.0, %v370
        %v373 = vsub.f32 0.0, %v371
        %v374 = vmul.f32 %v372, 1.442695
        %v375 = vpow.pop %v374
        %v376 = vmul.f32 %v373, 1.442695
        %v377 = vpow.pop %v376
        %v378 = vadd.f32 %v375, 1.0
        %v379 = vadd.f32 %v377, 1.0
        %v380 = vrcp.pop %v378
        %v381 = vrcp.pop %v379
        %v384 = vcombine.low %v380, %v381
        %386 = vst [vmem:[%s240] sm:$0x77] %v384
        %s387 = smul.u32 2, %s24
        %p388 = scmp.lt.s32.totalorder %s23, 1
        %s389 = scalar_select %p388, %s23, 1
        %p390 = scmp.lt.s32.totalorder %s387, 1
        %s391 = scalar_select %p390, %s387, 1
        %s392 = smul.addr %s389, 2
        %s393 = sadd.s32 %s391, %s392
        %s394 = smul.addr %s393, 4
        %s395 = scalar_lea.vmem %s3, %s394
        // Predicated region
        $region45: #{tpu_custom_call.1} parent=31 // pred_check
          %p396 = pneg %p121
        $region46: #{tpu_custom_call.1} parent=31 // pred_check_branch
          %398 = sbr.rel (%p396) target = $region48
        $region47: #{tpu_custom_call.1} parent=31 // pred_region
          %s399 = smul.u32 2, %s24
        $region48: #{tpu_custom_call.1} parent=31 // pred_fallthru
          _
      $region32: #{tpu_custom_call.1} parent=5 // pred_fallthru
        _
      %p400 = scmp.le.s32.totalorder 2, %s14
      // Predicated region
      $region49: #{tpu_custom_call.1} parent=5 // pred_check
        %p401 = pneg %p400
      $region50: #{tpu_custom_call.1} parent=5 // pred_check_branch
        %403 = sbr.rel (%p401) target = $region52
      $region51: #{tpu_custom_call.1} parent=5 // pred_region
        %s404 = ssub.s32 %s14, 2
        // Predicated region
        $region53: #{tpu_custom_call.1} parent=51 // pred_check
          %p405 = pneg %p127
        $region54: #{tpu_custom_call.1} parent=51 // pred_check_branch
          %407 = sbr.rel (%p405) target = $region56
        $region55: #{tpu_custom_call.1} parent=51 // pred_region
          %s408 = smul.u32 2, %s26
          %p409 = scmp.lt.s32.totalorder %s25, 1
          %s410 = scalar_select %p409, %s25, 1
          %p411 = scmp.lt.s32.totalorder %s408, 1
          %s412 = scalar_select %p411, %s408, 1
          %s413 = smul.addr %s410, 2
          %s414 = sadd.s32 %s412, %s413
          %s415 = smul.addr %s414, 4
          %s416 = scalar_lea.vmem %s3, %s415
        $region56: #{tpu_custom_call.1} parent=51 // pred_fallthru
          _
      $region52: #{tpu_custom_call.1} parent=5 // pred_fallthru
        _
    $region6: #{tpu_custom_call.1} parent=1 // loop_footer
      %s18 = sadd.s32 1, %s14
    $region7: #{tpu_custom_call.1} parent=1 // loop_footer_branch
      %13 = sbr.rel target = $region3
    $region8: #{tpu_custom_call.1} parent=1 // loop_exit
      _
    %417 = vsyncpa [#allocation3], 1
    %s418 = scalar_lea.sflag [#allocation3], 1
    %419 = vsyncpa %s418, 1
    %420 = vsyncpa [#allocation4], 1
    %s421 = scalar_lea.sflag [#allocation4], 1
    %422 = vsyncpa %s421, 1
    %423 = vsyncpa [#allocation5], 1
    %s424 = scalar_lea.sflag [#allocation5], 1
    %425 = vsyncpa %s424, 1

</llo_original>
